<compile_context>
chip_gen: v7x
topology: tpu7x:2x2x1
jax: 0.10.0
libtpu: 0.0.40
codegen_flags: <defaults>
</compile_context>

<pallas_src>
import math

import jax
import jax.numpy as jnp
from jax.experimental import pallas as pl
from jax.experimental.pallas import tpu as pltpu


def make_positional_encoding_table(d_model: int, max_len: int) -> jnp.ndarray:
    """Builds the (max_len, d_model) sin/cos table exactly as in the PyTorch __init__."""
    position = jnp.arange(0, max_len, dtype=jnp.float32)[:, None]            # (L, 1)
    div_term = jnp.exp(
        jnp.arange(0, d_model, 2, dtype=jnp.float32) * (-math.log(10000.0) / d_model)
    )                                                                        # (ceil(D/2),)
    angles = position * div_term                                             # (L, ceil(D/2))
    pe = jnp.zeros((max_len, d_model), dtype=jnp.float32)
    pe = pe.at[:, 0::2].set(jnp.sin(angles))
    if d_model % 2 != 0:
        pe = pe.at[:, 1::2].set(jnp.cos(angles)[:, :-1])
    else:
        pe = pe.at[:, 1::2].set(jnp.cos(angles))
    return pe


def _pos_enc_kernel(x_ref, pe_ref, o_ref):
    # x_ref:  (rows, lanes) slab of the flattened input
    # pe_ref: (1, lanes) or (rows, lanes) slab of the (flattened, dtype-matched) PE table
    # o_ref:  (rows, lanes)
    # Single VPU add; pe broadcasts over the leading dim when it has 1 row.
    o_ref[...] = x_ref[...] + pe_ref[...]


def _select_tiles(N: int, C: int, itemsize: int):
    """Pick (row_tile, lane_tile) so that 2x double-buffered (x tile + out tile)
    plus the resident pe chunk stays under ~8 MiB of VMEM on every generation."""
    budget = 8 * 1024 * 1024
    lane_tile = C
    # Only split the lane axis if even an 8-row, full-C tile blows the budget
    # (and only when C allows a multiple-of-128 chunk).
    if C % 128 == 0 and (4 * 8 + 2) * C * itemsize > budget:
        lane_tile = max(128, (budget // ((4 * 8 + 2) * itemsize)) // 128 * 128)
    row_budget = max(8, (budget - 2 * lane_tile * itemsize) // (4 * lane_tile * itemsize))
    row_tile = min((row_budget // 8) * 8, 1024)          # keep per-step DMA bounded
    row_tile = max(8, min(row_tile, ((N + 7) // 8) * 8))  # no bigger than needed
    return row_tile, lane_tile


def positional_encoding(x: jnp.ndarray, pe: jnp.ndarray) -> jnp.ndarray:
    """x: (N, L, D), pe: (max_len, D) with L == max_len (PyTorch broadcast
    requirement). Returns x + pe[None, :, :] (dropout treated as identity)."""
    N, L, D = x.shape
    assert pe.shape[0] == L and pe.shape[1] == D, (
        "PyTorch broadcasting in the reference module requires x.shape[1] == max_len")

    dtype = x.dtype
    itemsize = jnp.dtype(dtype).itemsize
    C = L * D
    pe_row = pe.reshape(1, C).astype(dtype)      # dtype-match pe wrapper-side
    total_bytes = N * C * itemsize

    SMALL = 1 << 20  # below ~1 MiB the op is entirely launch/DMA-overhead-bound

    if total_bytes <= SMALL:
        # ---------- tiny path: one grid step, densely packed sublanes ----------
        if N < 8 and (N * C) % (8 * 128) == 0:
            rows, cols = 8, (N * C) // 8
            x2 = x.reshape(rows, cols)                           # free row-major reshape
            pe2 = jnp.tile(pe_row, (N, 1)).reshape(rows, cols)   # only N*C elems, cheap
        else:
            rows, cols = N, C
            x2 = x.reshape(rows, cols)
            pe2 = pe_row                                         # broadcast in-kernel

        cost = pl.CostEstimate(
            flops=N * C,
            transcendentals=0,
            bytes_accessed=int((2 * N * C + pe2.size) * itemsize),
        )
        out = pl.pallas_call(
            _pos_enc_kernel,
            out_shape=jax.ShapeDtypeStruct((rows, cols), dtype),
            grid_spec=pltpu.PrefetchScalarGridSpec(
                num_scalar_prefetch=0,
                grid=(1,),
                in_specs=[
                    pl.BlockSpec((rows, cols), lambda i: (0, 0)),
                    pl.BlockSpec(pe2.shape, lambda i: (0, 0)),
                ],
                out_specs=pl.BlockSpec((rows, cols), lambda i: (0, 0)),
            ),
            compiler_params=pltpu.CompilerParams(
                dimension_semantics=("arbitrary",),
            ),
            cost_estimate=cost,
        )(x2, pe2)
        return out.reshape(N, L, D)

    # ---------- streaming path: (lane, row) grid, rows innermost ----------
    row_tile, lane_tile = _select_tiles(N, C, itemsize)
    x2 = x.reshape(N, C)
    grid = (pl.cdiv(C, lane_tile), pl.cdiv(N, row_tile))   # rows inner -> pe stays resident

    cost = pl.CostEstimate(
        flops=N * C,
        transcendentals=0,
        bytes_accessed=int((2 * N * C + C) * itemsize),
    )
    out = pl.pallas_call(
        _pos_enc_kernel,
        out_shape=jax.ShapeDtypeStruct((N, C), dtype),
        grid_spec=pltpu.PrefetchScalarGridSpec(
            num_scalar_prefetch=0,
            grid=grid,
            in_specs=[
                pl.BlockSpec((row_tile, lane_tile), lambda li, ri: (ri, li)),
                # pe chunk ignores the row index -> fetched once per lane chunk,
                # stays resident in VMEM across all row tiles.
                pl.BlockSpec((1, lane_tile), lambda li, ri: (0, li)),
            ],
            out_specs=pl.BlockSpec((row_tile, lane_tile), lambda li, ri: (ri, li)),
        ),
        compiler_params=pltpu.CompilerParams(
            dimension_semantics=("parallel", "parallel"),
        ),
        cost_estimate=cost,
    )(x2, pe_row)
    return out.reshape(N, L, D)


if __name__ == "__main__":
    # Shapes consistent with the module's typical use in this repo:
    # sequence/middle dim == max_len == 32, d_model == 32, leading dim 2.
    N = 2          # leading dim
    L = 32         # must equal max_len for the PyTorch broadcast
    D = 32         # d_model
    max_len = L

    key = jax.random.PRNGKey(0)
    k1, k2 = jax.random.split(key)
    x = jax.random.normal(k1, (N, L, D), dtype=jnp.float32)

    # "register_buffer" equivalent: precompute the sin/cos table once.
    pe = make_positional_encoding_table(D, max_len)

    # Tiny path (single dense block, sublane-repacked).
    out = jax.block_until_ready(positional_encoding(x, pe))
    ref = x + pe[None, :L, :]
    assert out.shape == (N, L, D)
    assert jnp.allclose(out, ref, atol=1e-6, rtol=1e-6)

    # Streaming path (row-tiled grid, pe resident across row tiles), still quick.
    N_big = 520
    x_big = jax.random.normal(k2, (N_big, L, D), dtype=jnp.float32)
    out_big = jax.block_until_ready(positional_encoding(x_big, pe))
    ref_big = x_big + pe[None, :L, :]
    assert jnp.allclose(out_big, ref_big, atol=1e-6, rtol=1e-6)

    print("KERNEL_OK")
</pallas_src>

<mosaic_0001>
module attributes {stable_mosaic.version = 11 : i64} {
  func.func @_pos_enc_kernel(%arg0: i32, %arg1: memref<8x256xf32, #tpu.memory_space<vmem>>, %arg2: memref<8x256xf32, #tpu.memory_space<vmem>>, %arg3: memref<8x256xf32, #tpu.memory_space<vmem>>) attributes {dimension_semantics = [#tpu.dimension_semantics<arbitrary>], iteration_bounds = array<i64: 1>, scalar_prefetch = 0 : i64, scratch_operands = 0 : i64, tpu.core_type = #tpu.core_type<tc>, window_params = [{pipeline_mode = #tpu.pipeline_mode<synchronous>, transform_indices = @transform_0, window_bounds = array<i64: 8, 256>}, {pipeline_mode = #tpu.pipeline_mode<synchronous>, transform_indices = @transform_1, window_bounds = array<i64: 8, 256>}, {pipeline_mode = #tpu.pipeline_mode<synchronous>, transform_indices = @transform_2, window_bounds = array<i64: 8, 256>}]} {
    %c0 = arith.constant 0 : index
    %c0_0 = arith.constant 0 : index
    %0 = vector.load %arg1[%c0, %c0_0] : memref<8x256xf32, #tpu.memory_space<vmem>>, vector<8x256xf32>
    %c0_1 = arith.constant 0 : index
    %c0_2 = arith.constant 0 : index
    %1 = vector.load %arg2[%c0_1, %c0_2] : memref<8x256xf32, #tpu.memory_space<vmem>>, vector<8x256xf32>
    %2 = arith.addf %0, %1 : vector<8x256xf32>
    %c0_3 = arith.constant 0 : index
    %c0_4 = arith.constant 0 : index
    %3 = vector.load %arg3[%c0_3, %c0_4] : memref<8x256xf32, #tpu.memory_space<vmem>>, vector<8x256xf32>
    tpu.vector_store %arg3[%c0_3, %c0_4], %2 {strides = array<i32>} : memref<8x256xf32, #tpu.memory_space<vmem>>, vector<8x256xf32>,
    return
  }
  func.func @transform_0(%arg0: i32) -> (i32, i32) {
    %c0_i32 = arith.constant 0 : i32
    %c0_i32_0 = arith.constant 0 : i32
    %c0_i32_1 = arith.constant 0 : i32
    return %c0_i32, %c0_i32_0 : i32, i32
  }
  func.func @transform_1(%arg0: i32) -> (i32, i32) {
    %c0_i32 = arith.constant 0 : i32
    %c0_i32_0 = arith.constant 0 : i32
    %c0_i32_1 = arith.constant 0 : i32
    return %c0_i32, %c0_i32_0 : i32, i32
  }
  func.func @transform_2(%arg0: i32) -> (i32, i32) {
    %c0_i32 = arith.constant 0 : i32
    %c0_i32_0 = arith.constant 0 : i32
    %c0_i32_1 = arith.constant 0 : i32
    return %c0_i32, %c0_i32_0 : i32, i32
  }
}

</mosaic_0001>

<llo_original>
// kernel: tpu_custom_call.1
$region0: #{tpu_custom_call.1}
  #allocation0 [shape = 'u32[]', space=smem, size = 0x4, offset = 0x4, fixed_abs, tag = 'smem constant byte address 0x4 - core index']
  #allocation1 [shape = 'u32[144,128]{1,0:T(1,128)}', space=vmem, size = 0x12000, scoped, tag = 'internal scratch']
  %s0 = inlined_call_operand.hbm [shape: f32[8,256], index: 0, kind: input, shape index: {}]
  %s1 = inlined_call_operand.hbm [shape: f32[8,256], index: 1, kind: input, shape index: {}]
  %s2 = inlined_call_operand.hbm [shape: f32[8,256], index: 2, kind: output, shape index: {}]
  %s3 = sld [smem:[#allocation0]]
  $region26: #{tpu_custom_call.1} parent=0
    _
  %s5 = ssub.s32 1, %s3
  %s6 = scalar_select 0, %s5, %s3
  $region1: #{tpu_custom_call.1} parent=0
    #allocation2 [shape = 'u8[8192]{0}', space=vmem, size = 0x2000, scoped, tag = 'input window, operand 0, single buffered']
    #allocation3 [shape = 's32[1]{0}', space=sflag, size = 0x4, scoped, tag = 'scoped memory for tpu_custom_call.1']
    #allocation4 [shape = 's32[1]{0}', space=sflag, size = 0x4, scoped, tag = 'scoped memory for tpu_custom_call.1']
    #allocation5 [shape = 'u8[8192]{0}', space=vmem, size = 0x2000, scoped, tag = 'input window, operand 1, single buffered']
    #allocation6 [shape = 's32[1]{0}', space=sflag, size = 0x4, scoped, tag = 'scoped memory for tpu_custom_call.1']
    #allocation7 [shape = 'u8[8192]{0}', space=vmem, size = 0x2000, scoped, tag = 'output window, operand 0, single buffered']
    %7 = vsyncpa [#allocation3], 0
    %8 = vsyncpa [#allocation6], 0
    %9 = vsyncpa [#allocation4], 0
    // Predicated region
    $region2: #{tpu_custom_call.1} parent=1 // pred_check
      _
    $region3: #{tpu_custom_call.1} parent=1 // pred_check_branch
      %11 = sbr.rel (0) target = $region5
    $region4: #{tpu_custom_call.1} parent=1 // pred_region
      %s13 = ssub.s32 256, 256
      %14 = vsyncadd [#allocation3], %s13
      %s16 = sshll.u32 [#allocation2], 4
      %s17 = int_to_ptr.vmem [resolvable:$true] %s16
      %19 = dma.hbm_to_vmem [thread:$0]  %s0, 256, %s17, [#allocation3]
    $region5: #{tpu_custom_call.1} parent=1 // pred_fallthru
      _
    // Predicated region
    $region6: #{tpu_custom_call.1} parent=1 // pred_check
      _
    $region7: #{tpu_custom_call.1} parent=1 // pred_check_branch
      %21 = sbr.rel (0) target = $region9
    $region8: #{tpu_custom_call.1} parent=1 // pred_region
      %s23 = ssub.s32 256, 256
      %24 = vsyncadd [#allocation6], %s23
      %s26 = sshll.u32 [#allocation5], 4
      %s27 = int_to_ptr.vmem [resolvable:$true] %s26
      %29 = dma.hbm_to_vmem [thread:$0]  %s1, 256, %s27, [#allocation6]
    $region9: #{tpu_custom_call.1} parent=1 // pred_fallthru
      _
    // Predicated region
    $region10: #{tpu_custom_call.1} parent=1 // pred_check
      _
    $region11: #{tpu_custom_call.1} parent=1 // pred_check_branch
      %31 = sbr.rel (0) target = $region13
    $region12: #{tpu_custom_call.1} parent=1 // pred_region
      %32 = dma.done [#allocation3], 256
    $region13: #{tpu_custom_call.1} parent=1 // pred_fallthru
      _
    // Predicated region
    $region14: #{tpu_custom_call.1} parent=1 // pred_check
      _
    $region15: #{tpu_custom_call.1} parent=1 // pred_check_branch
      %34 = sbr.rel (0) target = $region17
    $region16: #{tpu_custom_call.1} parent=1 // pred_region
      %35 = dma.done [#allocation6], 256
    $region17: #{tpu_custom_call.1} parent=1 // pred_fallthru
      _
    %v36 = vld [vmem:[#allocation2] sm:$0xff]
    %v37 = vld [vmem:[#allocation2 + $0x8] sm:$0xff]
    %v38 = vld [vmem:[#allocation5] sm:$0xff]
    %v39 = vld [vmem:[#allocation5 + $0x8] sm:$0xff]
    %v40 = vadd.f32 %v36, %v38
    %v41 = vadd.f32 %v37, %v39
    %42 = vst [vmem:[#allocation7] sm:$0xff] %v40
    %43 = vst [vmem:[#allocation7 + $0x8] sm:$0xff] %v41
    // Predicated region
    $region18: #{tpu_custom_call.1} parent=1 // pred_check
      _
    $region19: #{tpu_custom_call.1} parent=1 // pred_check_branch
      %45 = sbr.rel (0) target = $region21
    $region20: #{tpu_custom_call.1} parent=1 // pred_region
      %s47 = ssub.s32 256, 256
      %48 = vsyncadd [#allocation4], %s47
      %s50 = sshll.u32 [#allocation7], 4
      %s51 = int_to_ptr.vmem [resolvable:$true] %s50
      %53 = dma.vmem_to_hbm [thread:$0]  %s51, 256, %s2, [#allocation4]
    $region21: #{tpu_custom_call.1} parent=1 // pred_fallthru
      _
    // Predicated region
    $region22: #{tpu_custom_call.1} parent=1 // pred_check
      _
    $region23: #{tpu_custom_call.1} parent=1 // pred_check_branch
      %55 = sbr.rel (0) target = $region25
    $region24: #{tpu_custom_call.1} parent=1 // pred_region
      %56 = dma.done [#allocation4], 256
    $region25: #{tpu_custom_call.1} parent=1 // pred_fallthru
      _
    %57 = vsyncpa [#allocation3], 1
    %58 = vsyncpa [#allocation6], 1
    %59 = vsyncpa [#allocation4], 1

</llo_original>
